<compile_context>
chip_gen: v5e
topology: v5e:2x2
jax: 0.10.0
libtpu: 0.0.40
codegen_flags: <defaults>
</compile_context>

<pallas_src>
import jax
import jax.numpy as jnp
from functools import partial
from jax.experimental import pallas as pl
from jax.experimental.pallas import tpu as pltpu

EPS = 1e-5


# ------------------------------ kernel factory ------------------------------ #
def _make_kernel(batch, length, l_out, stride, expand, use_res, hidden, c_out):
    BL = batch * length
    BLO = batch * l_out
    inv_n_mid = 1.0 / float(BL)    # BN element count per channel before stride
    inv_n_out = 1.0 / float(BLO)   # ... after stride

    def bn_apply(h, gamma, beta, inv_n):
        # Training-mode BatchNorm1d: biased variance over (batch, length).
        # One pass (sum + sum-of-squares) in f32; variance clamped at 0 to avoid
        # rsqrt(NaN) from cancellation on near-constant channels.
        s = jnp.sum(h, axis=-1, keepdims=True)
        ss = jnp.sum(h * h, axis=-1, keepdims=True)
        mean = s * inv_n
        var = jnp.maximum(ss * inv_n - mean * mean, 0.0)
        scale = jax.lax.rsqrt(var + EPS) * gamma           # (C, 1)
        shift = beta - mean * scale                        # (C, 1)
        return h * scale + shift

    def relu6(h):
        return jnp.clip(h, 0.0, 6.0)

    def kernel(*refs):
        if stride != 1:
            acc_scr = refs[-1]          # VMEM scratch (hidden, BL) f32
            o_ref = refs[-2]
            in_refs = refs[:-2]
        else:
            o_ref = refs[-1]
            in_refs = refs[:-1]

        it = iter(in_refs)
        x = next(it)[...]                                   # (Cin, B*L) f32
        w1 = next(it)[...] if expand else None              # (H, Cin) bf16
        wdw = next(it)[...]                                 # (H, 3)   f32
        w2 = next(it)[...]                                  # (Cout, H) bf16
        bn = next(it)[...]                                  # (Cmax, 6) packed g/b f32

        # --- expand: 1x1 conv folded over batch -> one MXU matmul -----------
        # bf16 operands, f32 accumulate; BN stats computed on the f32 output.
        if expand:
            h = jnp.dot(w1, x.astype(jnp.bfloat16),
                        preferred_element_type=jnp.float32)          # (H, B*L) f32
            h = relu6(bn_apply(h, bn[:hidden, 0:1], bn[:hidden, 1:2], inv_n_mid))
        else:
            h = x

        # --- depthwise conv k=3, pad=1 via XLU roll + boundary masks --------
        # pos = position within each sequence along the folded B*L lane axis.
        pos = jax.lax.broadcasted_iota(jnp.int32, (1, BL), 1) % length
        h_prev = jnp.where(pos != 0,
                           pltpu.roll(h, shift=1, axis=1), 0.0)      # h[l-1], 0 at l==0
        # h[l+1]: cyclic shift BL-1 == shift -1 (wrap-around lanes are masked out).
        h_next = jnp.where(pos != length - 1,
                           pltpu.roll(h, shift=BL - 1, axis=1), 0.0)  # h[l+1], 0 at l==L-1
        acc = (wdw[:, 0:1] * h_prev
               + wdw[:, 1:2] * h
               + wdw[:, 2:3] * h_next)                               # (H, B*L) f32

        if stride != 1:
            # Stride subsample: spill acc once and re-read with a strided lane
            # slice (needs L % stride == 0 so folded index b*L + stride*lo is a
            # global stride-`stride` lane pattern).  Replaces the old quadratic
            # one-hot matmul.
            acc_scr[...] = acc
            acc = acc_scr[:, pl.ds(0, BLO, stride=stride)]           # (H, B*Lo)

        h2 = relu6(bn_apply(acc, bn[:hidden, 2:3], bn[:hidden, 3:4], inv_n_out))

        # --- project: 1x1 conv folded over batch -> one MXU matmul ----------
        y = jnp.dot(w2, h2.astype(jnp.bfloat16),
                    preferred_element_type=jnp.float32)              # (Cout, B*Lo) f32
        y = bn_apply(y, bn[:c_out, 4:5], bn[:c_out, 5:6], inv_n_out)

        if use_res:
            y = y + x

        o_ref[...] = y.astype(o_ref.dtype)

    return kernel


# -------------------------- one-time parameter packing ----------------------- #
def pack_params(params, c_in, c_out, expand_ratio):
    """Hoisted per-layer prep: bf16 MXU weights + a single packed (Cmax, 6) BN block."""
    hidden = c_in * expand_ratio
    expand = expand_ratio != 1
    cmax = max(hidden, c_out)

    g1 = params["g1"] if expand else jnp.ones((hidden,), jnp.float32)
    b1 = params["b1"] if expand else jnp.zeros((hidden,), jnp.float32)
    mid = jnp.stack([g1, b1, params["g2"], params["b2"]], axis=1)     # (hidden, 4)
    mid = jnp.pad(mid, ((0, cmax - hidden), (0, 0)))
    out = jnp.stack([params["g3"], params["b3"]], axis=1)             # (c_out, 2)
    out = jnp.pad(out, ((0, cmax - c_out), (0, 0)))
    bn = jnp.concatenate([mid, out], axis=1).astype(jnp.float32)      # (cmax, 6)

    packed = {
        "wdw": params["wdw"].astype(jnp.float32),          # (hidden, 3)  stays f32 (VPU)
        "w2": params["w2"].astype(jnp.bfloat16),           # (c_out, hidden) MXU operand
        "bn": bn,
    }
    if expand:
        packed["w1"] = params["w1"].astype(jnp.bfloat16)   # (hidden, c_in) MXU operand
    return packed


# --------------------------------- wrapper ---------------------------------- #
@partial(jax.jit, static_argnames=("stride", "expand_ratio"))
def inverted_residual(x, packed, *, stride, expand_ratio):
    """x: (B, C_in, L) float32.  packed: output of pack_params()."""
    B, c_in, L = x.shape
    c_out = packed["w2"].shape[0]
    hidden = c_in * expand_ratio
    expand = expand_ratio != 1
    use_res = (stride == 1) and (c_in == c_out)
    l_out = (L - 1) // stride + 1
    BL = B * L
    BLO = B * l_out
    if stride != 1:
        # TODO(synk): generalize the strided lane subsample to L % stride != 0
        # (needs per-sequence offsets instead of a single global stride pattern).
        assert L % stride == 0, "strided path assumes L divisible by stride"

    # layout plumbing (fused into the same XLA program by jit):
    # (B,C,L) -> channels-major (C, B*L): channels on sublanes, B*L on lanes.
    x2d = jnp.transpose(x, (1, 0, 2)).reshape(c_in, BL)

    inputs = [x2d]
    if expand:
        inputs.append(packed["w1"])
    inputs.append(packed["wdw"])
    inputs.append(packed["w2"])
    inputs.append(packed["bn"])

    kernel = _make_kernel(B, L, l_out, stride, expand, use_res, hidden, c_out)
    vmem = pl.BlockSpec(memory_space=pltpu.MemorySpace.VMEM)
    scratch_shapes = []
    if stride != 1:
        scratch_shapes.append(pltpu.VMEM((hidden, BL), jnp.float32))

    # Advisory cost estimate so XLA can schedule/overlap the custom call.
    flops = 2 * c_out * hidden * BLO + 8 * hidden * BL \
        + 12 * (hidden * BL + hidden * BLO + c_out * BLO)
    if expand:
        flops += 2 * hidden * c_in * BL
    bytes_accessed = sum(int(a.size) * a.dtype.itemsize for a in inputs) + 4 * c_out * BLO
    cost = pl.CostEstimate(flops=int(flops),
                           transcendentals=int(2 * hidden + c_out),
                           bytes_accessed=int(bytes_accessed))

    y2d = pl.pallas_call(
        kernel,
        out_shape=jax.ShapeDtypeStruct((c_out, BLO), x.dtype),   # lane-dense output
        in_specs=[vmem] * len(inputs),
        out_specs=vmem,
        scratch_shapes=scratch_shapes,
        cost_estimate=cost,
    )(*inputs)

    # back to PyTorch NCL layout
    return y2d.reshape(c_out, B, l_out).transpose(1, 0, 2)


# ----------------------- plain-JAX reference (for check) -------------------- #
def reference(x, params, *, stride, expand_ratio, mxu_bf16=False):
    def pw(w, h):
        if mxu_bf16:
            w = w.astype(jnp.bfloat16)
            h = h.astype(jnp.bfloat16)
        return jnp.einsum("oc,bcl->bol", w, h, preferred_element_type=jnp.float32)

    def bn(h, g, b):
        m = jnp.mean(h, axis=(0, 2), keepdims=True)
        v = jnp.mean((h - m) ** 2, axis=(0, 2), keepdims=True)
        return (h - m) * jax.lax.rsqrt(v + EPS) * g[None, :, None] + b[None, :, None]

    B, c_in, L = x.shape
    c_out = params["w2"].shape[0]
    use_res = (stride == 1) and (c_in == c_out)

    h = x
    if expand_ratio != 1:
        h = jnp.clip(bn(pw(params["w1"], x), params["g1"], params["b1"]), 0.0, 6.0)
    hidden = h.shape[1]
    l_out = (L - 1) // stride + 1
    hp = jnp.pad(h, ((0, 0), (0, 0), (1, 1)))
    acc = jnp.zeros((B, hidden, l_out), jnp.float32)
    for t in range(3):
        sl = hp[:, :, t: t + (l_out - 1) * stride + 1: stride]
        acc = acc + params["wdw"][:, t][None, :, None] * sl
    h2 = jnp.clip(bn(acc, params["g2"], params["b2"]), 0.0, 6.0)
    y = bn(pw(params["w2"], h2), params["g3"], params["b3"])
    if use_res:
        y = y + x
    return y


# ----------------------------------- main ------------------------------------ #
if __name__ == "__main__":
    def make_params(key, c_in, c_out, expand_ratio):
        hidden = c_in * expand_ratio
        ks = jax.random.split(key, 9)
        return {
            # pointwise expand conv: PyTorch weight (hidden, in, 1) -> (hidden, in)
            "w1": 0.1 * jax.random.normal(ks[0], (hidden, c_in), jnp.float32),
            "g1": 1.0 + 0.1 * jax.random.normal(ks[1], (hidden,), jnp.float32),
            "b1": 0.1 * jax.random.normal(ks[2], (hidden,), jnp.float32),
            # depthwise conv: PyTorch weight (hidden, 1, 3) -> (hidden, 3)
            "wdw": 0.1 * jax.random.normal(ks[3], (hidden, 3), jnp.float32),
            "g2": 1.0 + 0.1 * jax.random.normal(ks[4], (hidden,), jnp.float32),
            "b2": 0.1 * jax.random.normal(ks[5], (hidden,), jnp.float32),
            # pointwise project conv: PyTorch weight (out, hidden, 1) -> (out, hidden)
            "w2": 0.1 * jax.random.normal(ks[6], (c_out, hidden), jnp.float32),
            "g3": 1.0 + 0.1 * jax.random.normal(ks[7], (c_out,), jnp.float32),
            "b3": 0.1 * jax.random.normal(ks[8], (c_out,), jnp.float32),
        }

    key = jax.random.PRNGKey(0)
    # Shapes chosen so both B*L and B*l_out are multiples of 128 (lane-dense
    # inputs and stores; the strided config folds B=4 so B*l_out == 128).
    configs = [
        # (B, c_in, c_out, L, stride, expand_ratio)
        (2, 4, 4, 64, 1, 4),   # expand + residual (main case)
        (2, 8, 8, 64, 1, 1),   # no expand conv, residual
        (4, 4, 8, 64, 2, 4),   # strided, no residual, lane-dense output
    ]
    for idx, (B, ci, co, L, s, er) in enumerate(configs):
        kp, kx, key = jax.random.split(key, 3)
        params = make_params(kp, ci, co, er)
        packed = pack_params(params, ci, co, er)
        x = jax.random.normal(kx, (B, ci, L), jnp.float32)

        out = jax.block_until_ready(
            inverted_residual(x, packed, stride=s, expand_ratio=er))

        # Tight check vs a reference that mirrors the kernel's bf16 MXU inputs
        # (verifies the kernel logic), plus a looser check vs the pure-f32
        # reference (deviation bounded by bf16 input rounding on the two dots).
        ref_bf16 = reference(x, params, stride=s, expand_ratio=er, mxu_bf16=True)
        ref_f32 = reference(x, params, stride=s, expand_ratio=er, mxu_bf16=False)

        assert out.shape == ref_f32.shape, (idx, out.shape, ref_f32.shape)
        err_match = float(jnp.max(jnp.abs(out - ref_bf16)))
        err_full = float(jnp.max(jnp.abs(out - ref_f32)))
        assert err_match < 1e-2, (idx, err_match)
        assert err_full < 5e-2, (idx, err_full)

    print("KERNEL_OK")
</pallas_src>

<mosaic_0001>
module attributes {stable_mosaic.version = 11 : i64} {
  func.func @kernel(%arg0: memref<4x128xf32, #tpu.memory_space<vmem>>, %arg1: memref<16x4xbf16, #tpu.memory_space<vmem>>, %arg2: memref<16x3xf32, #tpu.memory_space<vmem>>, %arg3: memref<4x16xbf16, #tpu.memory_space<vmem>>, %arg4: memref<16x6xf32, #tpu.memory_space<vmem>>, %arg5: memref<4x128xf32, #tpu.memory_space<vmem>>) attributes {dimension_semantics = [], scalar_prefetch = 0 : i64, scratch_operands = 0 : i64, tpu.core_type = #tpu.core_type<tc>} {
    %c0 = arith.constant 0 : index
    %c0_0 = arith.constant 0 : index
    %0 = vector.load %arg0[%c0, %c0_0] : memref<4x128xf32, #tpu.memory_space<vmem>>, vector<4x128xf32>
    %c0_1 = arith.constant 0 : index
    %c0_2 = arith.constant 0 : index
    %1 = vector.load %arg1[%c0_1, %c0_2] : memref<16x4xbf16, #tpu.memory_space<vmem>>, vector<16x4xbf16>
    %c0_3 = arith.constant 0 : index
    %c0_4 = arith.constant 0 : index
    %2 = vector.load %arg2[%c0_3, %c0_4] : memref<16x3xf32, #tpu.memory_space<vmem>>, vector<16x3xf32>
    %c0_5 = arith.constant 0 : index
    %c0_6 = arith.constant 0 : index
    %3 = vector.load %arg3[%c0_5, %c0_6] : memref<4x16xbf16, #tpu.memory_space<vmem>>, vector<4x16xbf16>
    %c0_7 = arith.constant 0 : index
    %c0_8 = arith.constant 0 : index
    %4 = vector.load %arg4[%c0_7, %c0_8] : memref<16x6xf32, #tpu.memory_space<vmem>>, vector<16x6xf32>
    %5 = arith.truncf %0 : vector<4x128xf32> to vector<4x128xbf16>
    %cst = arith.constant dense<0.000000e+00> : vector<16x128xf32>
    %6 = tpu.matmul %1, %5, %cst {dimension_numbers = #tpu.dot_dimension_numbers<[1], [0], [0], [1], [0, 0, 1, 1], [], []>} : vector<16x4xbf16>, vector<4x128xbf16>, vector<16x128xf32> -> vector<16x128xf32>
    %7 = vector.extract_strided_slice %4 {offsets = [0, 0], sizes = [16, 1], strides = [1, 1]} : vector<16x6xf32> to vector<16x1xf32>
    %8 = vector.extract_strided_slice %4 {offsets = [0, 1], sizes = [16, 1], strides = [1, 1]} : vector<16x6xf32> to vector<16x1xf32>
    %cst_9 = arith.constant dense<0.000000e+00> : vector<16xf32>
    %9 = vector.multi_reduction <add>, %6, %cst_9 [1] : vector<16x128xf32> to vector<16xf32>
    %10 = vector.shape_cast %9 : vector<16xf32> to vector<16x1xf32>
    %11 = arith.mulf %6, %6 : vector<16x128xf32>
    %cst_10 = arith.constant dense<0.000000e+00> : vector<16xf32>
    %12 = vector.multi_reduction <add>, %11, %cst_10 [1] : vector<16x128xf32> to vector<16xf32>
    %13 = vector.shape_cast %12 : vector<16xf32> to vector<16x1xf32>
    %cst_11 = arith.constant 7.812500e-03 : f32
    %14 = vector.broadcast %cst_11 : f32 to vector<16x1xf32>
    %15 = arith.mulf %10, %14 : vector<16x1xf32>
    %cst_12 = arith.constant 7.812500e-03 : f32
    %16 = vector.broadcast %cst_12 : f32 to vector<16x1xf32>
    %17 = arith.mulf %13, %16 : vector<16x1xf32>
    %18 = arith.mulf %15, %15 : vector<16x1xf32>
    %19 = arith.subf %17, %18 : vector<16x1xf32>
    %cst_13 = arith.constant 0.000000e+00 : f32
    %20 = vector.broadcast %cst_13 : f32 to vector<16x1xf32>
    %21 = arith.maximumf %19, %20 : vector<16x1xf32>
    %cst_14 = arith.constant 9.99999974E-6 : f32
    %22 = vector.broadcast %cst_14 : f32 to vector<16x1xf32>
    %23 = arith.addf %21, %22 : vector<16x1xf32>
    %24 = math.rsqrt %23 : vector<16x1xf32>
    %25 = arith.mulf %24, %7 : vector<16x1xf32>
    %26 = arith.mulf %15, %25 : vector<16x1xf32>
    %27 = arith.subf %8, %26 : vector<16x1xf32>
    %28 = vector.broadcast %25 : vector<16x1xf32> to vector<16x128xf32>
    %29 = arith.mulf %6, %28 : vector<16x128xf32>
    %30 = vector.broadcast %27 : vector<16x1xf32> to vector<16x128xf32>
    %31 = arith.addf %29, %30 : vector<16x128xf32>
    %cst_15 = arith.constant 0.000000e+00 : f32
    %cst_16 = arith.constant 6.000000e+00 : f32
    %32 = vector.broadcast %cst_15 : f32 to vector<16x128xf32>
    %33 = arith.maximumf %32, %31 : vector<16x128xf32>
    %34 = vector.broadcast %cst_16 : f32 to vector<16x128xf32>
    %35 = arith.minimumf %34, %33 : vector<16x128xf32>
    %36 = tpu.iota {dimensions = array<i32: 1>} : vector<1x128xi32>
    %c64_i32 = arith.constant 64 : i32
    %c0_i32 = arith.constant 0 : i32
    %37 = arith.cmpi eq, %c64_i32, %c0_i32 : i32
    %c1_i32 = arith.constant 1 : i32
    %38 = arith.select %37, %c1_i32, %c64_i32 : i32
    %39 = vector.broadcast %38 : i32 to vector<1x128xi32>
    %40 = arith.remsi %36, %39 : vector<1x128xi32>
    %c0_i32_17 = arith.constant 0 : i32
    %41 = vector.broadcast %c0_i32_17 : i32 to vector<1x128xi32>
    %42 = arith.cmpi ne, %40, %41 : vector<1x128xi32>
    %c0_i32_18 = arith.constant 0 : i32
    %43 = vector.broadcast %c0_i32_18 : i32 to vector<1x128xi32>
    %44 = arith.cmpi slt, %40, %43 : vector<1x128xi32>
    %c0_i32_19 = arith.constant 0 : i32
    %45 = arith.cmpi slt, %38, %c0_i32_19 : i32
    %46 = vector.broadcast %45 : i1 to vector<1x128xi1>
    %47 = vector.broadcast %46 : vector<1x128xi1> to vector<1x128xi1>
    %48 = arith.xori %44, %47 : vector<1x128xi1>
    %49 = arith.andi %48, %42 : vector<1x128xi1>
    %50 = vector.broadcast %38 : i32 to vector<1x128xi32>
    %51 = arith.addi %40, %50 : vector<1x128xi32>
    %52 = arith.select %49, %51, %40 : vector<1x128xi1>, vector<1x128xi32>
    %c0_i32_20 = arith.constant 0 : i32
    %53 = vector.broadcast %c0_i32_20 : i32 to vector<1x128xi32>
    %54 = arith.cmpi ne, %52, %53 : vector<1x128xi32>
    %c1_i32_21 = arith.constant 1 : i32
    %55 = tpu.dynamic_rotate %35 by %c1_i32_21 dim 1 : vector<16x128xf32>, i32 -> vector<16x128xf32>
    %cst_22 = arith.constant 0.000000e+00 : f32
    %56 = vector.shape_cast %54 : vector<1x128xi1> to vector<1x128xi1>
    %57 = vector.broadcast %56 : vector<1x128xi1> to vector<16x128xi1>
    %58 = vector.broadcast %cst_22 : f32 to vector<16x128xf32>
    %59 = arith.select %57, %55, %58 : vector<16x128xi1>, vector<16x128xf32>
    %c63_i32 = arith.constant 63 : i32
    %60 = vector.broadcast %c63_i32 : i32 to vector<1x128xi32>
    %61 = arith.cmpi ne, %52, %60 : vector<1x128xi32>
    %c127_i32 = arith.constant 127 : i32
    %62 = tpu.dynamic_rotate %35 by %c127_i32 dim 1 : vector<16x128xf32>, i32 -> vector<16x128xf32>
    %cst_23 = arith.constant 0.000000e+00 : f32
    %63 = vector.shape_cast %61 : vector<1x128xi1> to vector<1x128xi1>
    %64 = vector.broadcast %63 : vector<1x128xi1> to vector<16x128xi1>
    %65 = vector.broadcast %cst_23 : f32 to vector<16x128xf32>
    %66 = arith.select %64, %62, %65 : vector<16x128xi1>, vector<16x128xf32>
    %67 = vector.extract_strided_slice %2 {offsets = [0, 0], sizes = [16, 1], strides = [1, 1]} : vector<16x3xf32> to vector<16x1xf32>
    %68 = vector.broadcast %67 : vector<16x1xf32> to vector<16x128xf32>
    %69 = arith.mulf %68, %59 : vector<16x128xf32>
    %70 = vector.extract_strided_slice %2 {offsets = [0, 1], sizes = [16, 1], strides = [1, 1]} : vector<16x3xf32> to vector<16x1xf32>
    %71 = vector.broadcast %70 : vector<16x1xf32> to vector<16x128xf32>
    %72 = arith.mulf %71, %35 : vector<16x128xf32>
    %73 = arith.addf %69, %72 : vector<16x128xf32>
    %74 = vector.extract_strided_slice %2 {offsets = [0, 2], sizes = [16, 1], strides = [1, 1]} : vector<16x3xf32> to vector<16x1xf32>
    %75 = vector.broadcast %74 : vector<16x1xf32> to vector<16x128xf32>
    %76 = arith.mulf %75, %66 : vector<16x128xf32>
    %77 = arith.addf %73, %76 : vector<16x128xf32>
    %78 = vector.extract_strided_slice %4 {offsets = [0, 2], sizes = [16, 1], strides = [1, 1]} : vector<16x6xf32> to vector<16x1xf32>
    %79 = vector.extract_strided_slice %4 {offsets = [0, 3], sizes = [16, 1], strides = [1, 1]} : vector<16x6xf32> to vector<16x1xf32>
    %cst_24 = arith.constant dense<0.000000e+00> : vector<16xf32>
    %80 = vector.multi_reduction <add>, %77, %cst_24 [1] : vector<16x128xf32> to vector<16xf32>
    %81 = vector.shape_cast %80 : vector<16xf32> to vector<16x1xf32>
    %82 = arith.mulf %77, %77 : vector<16x128xf32>
    %cst_25 = arith.constant dense<0.000000e+00> : vector<16xf32>
    %83 = vector.multi_reduction <add>, %82, %cst_25 [1] : vector<16x128xf32> to vector<16xf32>
    %84 = vector.shape_cast %83 : vector<16xf32> to vector<16x1xf32>
    %cst_26 = arith.constant 7.812500e-03 : f32
    %85 = vector.broadcast %cst_26 : f32 to vector<16x1xf32>
    %86 = arith.mulf %81, %85 : vector<16x1xf32>
    %cst_27 = arith.constant 7.812500e-03 : f32
    %87 = vector.broadcast %cst_27 : f32 to vector<16x1xf32>
    %88 = arith.mulf %84, %87 : vector<16x1xf32>
    %89 = arith.mulf %86, %86 : vector<16x1xf32>
    %90 = arith.subf %88, %89 : vector<16x1xf32>
    %cst_28 = arith.constant 0.000000e+00 : f32
    %91 = vector.broadcast %cst_28 : f32 to vector<16x1xf32>
    %92 = arith.maximumf %90, %91 : vector<16x1xf32>
    %cst_29 = arith.constant 9.99999974E-6 : f32
    %93 = vector.broadcast %cst_29 : f32 to vector<16x1xf32>
    %94 = arith.addf %92, %93 : vector<16x1xf32>
    %95 = math.rsqrt %94 : vector<16x1xf32>
    %96 = arith.mulf %95, %78 : vector<16x1xf32>
    %97 = arith.mulf %86, %96 : vector<16x1xf32>
    %98 = arith.subf %79, %97 : vector<16x1xf32>
    %99 = vector.broadcast %96 : vector<16x1xf32> to vector<16x128xf32>
    %100 = arith.mulf %77, %99 : vector<16x128xf32>
    %101 = vector.broadcast %98 : vector<16x1xf32> to vector<16x128xf32>
    %102 = arith.addf %100, %101 : vector<16x128xf32>
    %cst_30 = arith.constant 0.000000e+00 : f32
    %cst_31 = arith.constant 6.000000e+00 : f32
    %103 = vector.broadcast %cst_30 : f32 to vector<16x128xf32>
    %104 = arith.maximumf %103, %102 : vector<16x128xf32>
    %105 = vector.broadcast %cst_31 : f32 to vector<16x128xf32>
    %106 = arith.minimumf %105, %104 : vector<16x128xf32>
    %107 = arith.truncf %106 : vector<16x128xf32> to vector<16x128xbf16>
    %cst_32 = arith.constant dense<0.000000e+00> : vector<4x128xf32>
    %108 = tpu.matmul %3, %107, %cst_32 {dimension_numbers = #tpu.dot_dimension_numbers<[1], [0], [0], [1], [0, 0, 1, 1], [], []>} : vector<4x16xbf16>, vector<16x128xbf16>, vector<4x128xf32> -> vector<4x128xf32>
    %109 = vector.extract_strided_slice %4 {offsets = [0, 4], sizes = [4, 1], strides = [1, 1]} : vector<16x6xf32> to vector<4x1xf32>
    %110 = vector.extract_strided_slice %4 {offsets = [0, 5], sizes = [4, 1], strides = [1, 1]} : vector<16x6xf32> to vector<4x1xf32>
    %cst_33 = arith.constant dense<0.000000e+00> : vector<4xf32>
    %111 = vector.multi_reduction <add>, %108, %cst_33 [1] : vector<4x128xf32> to vector<4xf32>
    %112 = vector.shape_cast %111 : vector<4xf32> to vector<4x1xf32>
    %113 = arith.mulf %108, %108 : vector<4x128xf32>
    %cst_34 = arith.constant dense<0.000000e+00> : vector<4xf32>
    %114 = vector.multi_reduction <add>, %113, %cst_34 [1] : vector<4x128xf32> to vector<4xf32>
    %115 = vector.shape_cast %114 : vector<4xf32> to vector<4x1xf32>
    %cst_35 = arith.constant 7.812500e-03 : f32
    %116 = vector.broadcast %cst_35 : f32 to vector<4x1xf32>
    %117 = arith.mulf %112, %116 : vector<4x1xf32>
    %cst_36 = arith.constant 7.812500e-03 : f32
    %118 = vector.broadcast %cst_36 : f32 to vector<4x1xf32>
    %119 = arith.mulf %115, %118 : vector<4x1xf32>
    %120 = arith.mulf %117, %117 : vector<4x1xf32>
    %121 = arith.subf %119, %120 : vector<4x1xf32>
    %cst_37 = arith.constant 0.000000e+00 : f32
    %122 = vector.broadcast %cst_37 : f32 to vector<4x1xf32>
    %123 = arith.maximumf %121, %122 : vector<4x1xf32>
    %cst_38 = arith.constant 9.99999974E-6 : f32
    %124 = vector.broadcast %cst_38 : f32 to vector<4x1xf32>
    %125 = arith.addf %123, %124 : vector<4x1xf32>
    %126 = math.rsqrt %125 : vector<4x1xf32>
    %127 = arith.mulf %126, %109 : vector<4x1xf32>
    %128 = arith.mulf %117, %127 : vector<4x1xf32>
    %129 = arith.subf %110, %128 : vector<4x1xf32>
    %130 = vector.broadcast %127 : vector<4x1xf32> to vector<4x128xf32>
    %131 = arith.mulf %108, %130 : vector<4x128xf32>
    %132 = vector.broadcast %129 : vector<4x1xf32> to vector<4x128xf32>
    %133 = arith.addf %131, %132 : vector<4x128xf32>
    %134 = arith.addf %133, %0 : vector<4x128xf32>
    %c0_39 = arith.constant 0 : index
    %c0_40 = arith.constant 0 : index
    %135 = vector.load %arg5[%c0_39, %c0_40] : memref<4x128xf32, #tpu.memory_space<vmem>>, vector<4x128xf32>
    tpu.vector_store %arg5[%c0_39, %c0_40], %134 {strides = array<i32>} : memref<4x128xf32, #tpu.memory_space<vmem>>, vector<4x128xf32>,
    return
  }
}

</mosaic_0001>

<llo_original>
// kernel: inverted_residual.1
$region0: #{inverted_residual.1}
  #allocation0 [shape = 'u32[]', space=smem, size = 0x4, offset = 0x4, fixed_abs, tag = 'smem constant byte address 0x4 - core index']
  #allocation1 [shape = 'u32[72,128]{1,0:T(1,128)}', space=vmem, size = 0x9000, scoped, tag = 'internal scratch']
  %s0 = inlined_call_operand.vmem [shape: f32[4,128], index: 0, kind: input, shape index: {}]
  %s1 = inlined_call_operand.vmem [shape: bf16[16,4], index: 1, kind: input, shape index: {}]
  %s2 = inlined_call_operand.vmem [shape: f32[16,3], index: 2, kind: input, shape index: {}]
  %s3 = inlined_call_operand.vmem [shape: bf16[4,16], index: 3, kind: input, shape index: {}]
  %s4 = inlined_call_operand.vmem [shape: f32[16,6], index: 4, kind: input, shape index: {}]
  %s5 = inlined_call_operand.vmem [shape: f32[4,128], index: 5, kind: output, shape index: {}]
  %s6 = sld [smem:[#allocation0]]
  $region30: #{inverted_residual.1} parent=0
    _
  %s8 = ssub.s32 1, %s6
  %s9 = scalar_select 0, %s8, %s6
  // Predicated region
  $region2: #{inverted_residual.1} parent=0 // pred_check
    _
  $region3: #{inverted_residual.1} parent=0 // pred_check_branch
    %11 = sbr.rel (0) target = $region5
  $region4: #{inverted_residual.1} parent=0 // pred_region
    _
  $region5: #{inverted_residual.1} parent=0 // pred_fallthru
    _
  // Predicated region
  $region6: #{inverted_residual.1} parent=0 // pred_check
    _
  $region7: #{inverted_residual.1} parent=0 // pred_check_branch
    %13 = sbr.rel (0) target = $region9
  $region8: #{inverted_residual.1} parent=0 // pred_region
    _
  $region9: #{inverted_residual.1} parent=0 // pred_fallthru
    _
  // Predicated region
  $region10: #{inverted_residual.1} parent=0 // pred_check
    _
  $region11: #{inverted_residual.1} parent=0 // pred_check_branch
    %15 = sbr.rel (0) target = $region13
  $region12: #{inverted_residual.1} parent=0 // pred_region
    _
  $region13: #{inverted_residual.1} parent=0 // pred_fallthru
    _
  // Predicated region
  $region14: #{inverted_residual.1} parent=0 // pred_check
    _
  $region15: #{inverted_residual.1} parent=0 // pred_check_branch
    %17 = sbr.rel (0) target = $region17
  $region16: #{inverted_residual.1} parent=0 // pred_region
    _
  $region17: #{inverted_residual.1} parent=0 // pred_fallthru
    _
  // Predicated region
  $region18: #{inverted_residual.1} parent=0 // pred_check
    _
  $region19: #{inverted_residual.1} parent=0 // pred_check_branch
    %19 = sbr.rel (0) target = $region21
  $region20: #{inverted_residual.1} parent=0 // pred_region
    _
  $region21: #{inverted_residual.1} parent=0 // pred_fallthru
    _
  %v21 = vld [vmem:[%s0] sm:$0xf]
  %v22 = vld [vmem:[%s1] sm:$0xf]
  %v23 = vld [vmem:[%s1 + $0x4] sm:$0xf]
  %v24 = vld [vmem:[%s2] sm:$0xff]
  %v25 = vld [vmem:[%s2 + $0x8] sm:$0xff]
  %v26 = vld [vmem:[%s3] sm:$0x3]
  %v27 = vld [vmem:[%s4] sm:$0xff]
  %v28 = vld [vmem:[%s4 + $0x8] sm:$0xff]
  %v29 = vpack.c.bf16 %v21, %v21
  %v32 = vunpack.c.l.b16 %v22
  %v33 = vunpack.c.l.b16 %v23
  %v34 = vpack.c.b16 %v33, %v32
  %vm35 = vcmask 31744
  %v37 = vsel %vm35, %v34, 0
  %vm39 = vcmask 1041408
  %v41 = vsel %vm39, %v29, 0
  %43 = vmatpush.bf16.msra.mxu0 0
  %44 = vmatpush.bf16.msra.mxu0 0
  %45 = vmatpush.bf16.msra.mxu0 0
  %46 = vmatpush.bf16.msra.mxu0 0
  %47 = vmatpush.bf16.msra.mxu0 0
  %48 = vmatpush.bf16.msra.mxu0 0
  %49 = vmatpush.bf16.msra.mxu0 0
  %50 = vmatpush.bf16.msra.mxu0 %v41
  %51 = vmatmul.bf16.gmra.mxu0 %v37
  %v52 = vpop.f32.mrf.mxu0
  %v53 = vadd.f32 0.0, %v52
  %v54 = vpop.f32.mrf.mxu0
  %v55 = vadd.f32 0.0, %v54
  %56 = vdwg.mxu0
  %57 = vadd.xlane.f32.xlu0 %v53
  %v58 = vpop.xlane.xlu0 %57
  %59 = vadd.xlane.f32.xlu0 %v55
  %v60 = vpop.xlane.xlu0 %59
  %v61 = vmul.f32 %v53, %v53
  %v62 = vmul.f32 %v55, %v55
  %63 = vadd.xlane.f32.xlu0 %v61
  %v64 = vpop.xlane.xlu0 %63
  %65 = vadd.xlane.f32.xlu0 %v62
  %v66 = vpop.xlane.xlu0 %65
  %v67 = vmul.f32 %v58, 0.0078125
  %v68 = vmul.f32 %v60, 0.0078125
  %v69 = vmul.f32 %v64, 0.0078125
  %v70 = vmul.f32 %v66, 0.0078125
  %v71 = vmul.f32 %v67, %v67
  %v72 = vmul.f32 %v68, %v68
  %v73 = vsub.f32 %v69, %v71
  %v74 = vsub.f32 %v70, %v72
  %v75 = vmax.f32 %v73, 0.0
  %v76 = vmax.f32 %v74, 0.0
  %v77 = vadd.f32 %v75, 1e-05
  %v78 = vadd.f32 %v76, 1e-05
  %v79 = vrsqrt.pop %v77
  %v80 = vmul.f32 %v79, %v77
  %v81 = vmul.f32 %v80, %v79
  %v82 = vmul.f32 0.5, %v81
  %v83 = vsub.f32 1.5, %v82
  %v84 = vmul.f32 %v79, %v83
  %vm85 = vweird.f32 %v77
  %vm86 = vweird.f32 %v79
  %vm87 = vmor %vm85, %vm86
  %v88 = vsel %vm87, %v79, %v84
  %v89 = vrsqrt.pop %v78
  %v90 = vmul.f32 %v89, %v78
  %v91 = vmul.f32 %v90, %v89
  %v92 = vmul.f32 0.5, %v91
  %v93 = vsub.f32 1.5, %v92
  %v94 = vmul.f32 %v89, %v93
  %vm95 = vweird.f32 %v78
  %vm96 = vweird.f32 %v89
  %vm97 = vmor %vm95, %vm96
  %v98 = vsel %vm97, %v89, %v94
  %v99 = vmul.f32 %v88, %v27
  %v100 = vmul.f32 %v98, %v28
  %v101 = vmul.f32 %v67, %v99
  %v102 = vmul.f32 %v68, %v100
  %105 = vrot.lane.b32.xlu0 %v101, 1
  %v106 = vpop.permute.xlu0 %105
  %107 = vrot.lane.b32.xlu0 %v102, 1
  %v108 = vpop.permute.xlu0 %107
  %v111 = vsub.f32 %v27, %v106
  %v112 = vsub.f32 %v28, %v108
  %114 = vset.pattern.permute.xlu0 0
  %115 = vperm.xlu0 %114, %v99
  %v116 = vpop.permute.xlu0 %115
  %119 = vset.pattern.permute.xlu0 0
  %120 = vperm.xlu0 %119, %v100
  %v121 = vpop.permute.xlu0 %120
  %v123 = vmul.f32 %v53, %v116
  %v124 = vmul.f32 %v55, %v121
  %126 = vset.pattern.permute.xlu0 1
  %127 = vperm.xlu0 %126, %v111
  %v128 = vpop.permute.xlu0 %127
  %131 = vset.pattern.permute.xlu0 1
  %132 = vperm.xlu0 %131, %v112
  %v133 = vpop.permute.xlu0 %132
  %v135 = vadd.f32 %v123, %v128
  %v136 = vadd.f32 %v124, %v133
  %v137 = vmax.f32 %v135, 0.0
  %v138 = vmax.f32 %v136, 0.0
  %v139 = vmin.f32 %v137, 6.0
  %v140 = vmin.f32 %v138, 6.0
  %v141 = vlaneseq
  %v142 = vand.u32 %v141, 127
  %vm143 = vcmp.lt.s32.totalorder %v142, 0
  %v144 = vsub.s32 0, %v142
  %v145 = vsel %vm143, %v144, %v142
  %v146 = vshrl.u32 %v145, 6
  %v147 = vand.u32 %v145, 63
  %v148 = vsub.s32 0, %v147
  %v149 = vsel %vm143, %v148, %v147
  %vm150 = vcmp.ne.s32.totalorder %v149, 0
  %vm151 = vcmp.lt.s32.totalorder %v149, 0
  %vm152 = vmand %vm151, %vm150
  %v153 = vadd.s32 %v149, 64
  %v154 = vsel %vm152, %v153, %v149
  %vm155 = vcmp.ne.s32.totalorder %v154, 0
  %156 = vrot.lane.b32.xlu0 %v139, 1
  %v157 = vpop.permute.xlu0 %156
  %158 = vrot.lane.b32.xlu0 %v140, 1
  %v159 = vpop.permute.xlu0 %158
  %v160 = vsel %vm155, 1, 0
  %vm161 = vcmp.eq.s32.totalorder %v160, 1
  %v162 = vsel %vm161, %v157, 0.0
  %v163 = vsel %vm161, %v159, 0.0
  %vm164 = vcmp.ne.s32.totalorder %v154, 63
  %165 = vrot.lane.b32.xlu0 %v139, 127
  %v166 = vpop.permute.xlu0 %165
  %167 = vrot.lane.b32.xlu0 %v140, 127
  %v168 = vpop.permute.xlu0 %167
  %v169 = vsel %vm164, 1, 0
  %vm170 = vcmp.eq.s32.totalorder %v169, 1
  %v171 = vsel %vm170, %v166, 0.0
  %v172 = vsel %vm170, %v168, 0.0
  %174 = vset.pattern.permute.xlu0 0
  %175 = vperm.xlu0 %174, %v24
  %v176 = vpop.permute.xlu0 %175
  %179 = vset.pattern.permute.xlu0 0
  %180 = vperm.xlu0 %179, %v25
  %v181 = vpop.permute.xlu0 %180
  %v183 = vmul.f32 %v176, %v162
  %v184 = vmul.f32 %v181, %v163
  %185 = vset.pattern.permute.xlu0 1
  %186 = vperm.xlu0 %185, %v24
  %v187 = vpop.permute.xlu0 %186
  %189 = vset.pattern.permute.xlu0 1
  %190 = vperm.xlu0 %189, %v25
  %v191 = vpop.permute.xlu0 %190
  %v193 = vmul.f32 %v187, %v139
  %v194 = vmul.f32 %v191, %v140
  %v195 = vadd.f32 %v183, %v193
  %v196 = vadd.f32 %v184, %v194
  %197 = vset.pattern.permute.xlu0 2
  %198 = vperm.xlu0 %197, %v24
  %v199 = vpop.permute.xlu0 %198
  %201 = vset.pattern.permute.xlu0 2
  %202 = vperm.xlu0 %201, %v25
  %v203 = vpop.permute.xlu0 %202
  %v205 = vmul.f32 %v199, %v171
  %v206 = vmul.f32 %v203, %v172
  %v207 = vadd.f32 %v195, %v205
  %v208 = vadd.f32 %v196, %v206
  %209 = vadd.xlane.f32.xlu0 %v207
  %v210 = vpop.xlane.xlu0 %209
  %211 = vadd.xlane.f32.xlu0 %v208
  %v212 = vpop.xlane.xlu0 %211
  %v213 = vmul.f32 %v207, %v207
  %v214 = vmul.f32 %v208, %v208
  %215 = vadd.xlane.f32.xlu0 %v213
  %v216 = vpop.xlane.xlu0 %215
  %217 = vadd.xlane.f32.xlu0 %v214
  %v218 = vpop.xlane.xlu0 %217
  %v219 = vmul.f32 %v210, 0.0078125
  %v220 = vmul.f32 %v212, 0.0078125
  %v221 = vmul.f32 %v216, 0.0078125
  %v222 = vmul.f32 %v218, 0.0078125
  %v223 = vmul.f32 %v219, %v219
  %v224 = vmul.f32 %v220, %v220
  %v225 = vsub.f32 %v221, %v223
  %v226 = vsub.f32 %v222, %v224
  %v227 = vmax.f32 %v225, 0.0
  %v228 = vmax.f32 %v226, 0.0
  %v229 = vadd.f32 %v227, 1e-05
  %v230 = vadd.f32 %v228, 1e-05
  %v231 = vrsqrt.pop %v229
  %v232 = vmul.f32 %v231, %v229
  %v233 = vmul.f32 %v232, %v231
  %v234 = vmul.f32 0.5, %v233
  %v235 = vsub.f32 1.5, %v234
  %v236 = vmul.f32 %v231, %v235
  %vm237 = vweird.f32 %v229
  %vm238 = vweird.f32 %v231
  %vm239 = vmor %vm237, %vm238
  %v240 = vsel %vm239, %v231, %v236
  %v241 = vrsqrt.pop %v230
  %v242 = vmul.f32 %v241, %v230
  %v243 = vmul.f32 %v242, %v241
  %v244 = vmul.f32 0.5, %v243
  %v245 = vsub.f32 1.5, %v244
  %v246 = vmul.f32 %v241, %v245
  %vm247 = vweird.f32 %v230
  %vm248 = vweird.f32 %v241
  %vm249 = vmor %vm247, %vm248
  %v250 = vsel %vm249, %v241, %v246
  %v251 = vmul.f32 %v240, %v27
  %v252 = vmul.f32 %v250, %v28
  %v253 = vmul.f32 %v219, %v251
  %v254 = vmul.f32 %v220, %v252
  %257 = vrot.lane.b32.xlu0 %v253, 1
  %v258 = vpop.permute.xlu0 %257
  %259 = vrot.lane.b32.xlu0 %v254, 1
  %v260 = vpop.permute.xlu0 %259
  %v263 = vsub.f32 %v27, %v258
  %v264 = vsub.f32 %v28, %v260
  %266 = vset.pattern.permute.xlu0 2
  %267 = vperm.xlu0 %266, %v251
  %v268 = vpop.permute.xlu0 %267
  %271 = vset.pattern.permute.xlu0 2
  %272 = vperm.xlu0 %271, %v252
  %v273 = vpop.permute.xlu0 %272
  %v275 = vmul.f32 %v207, %v268
  %v276 = vmul.f32 %v208, %v273
  %278 = vset.pattern.permute.xlu0 3
  %279 = vperm.xlu0 %278, %v263
  %v280 = vpop.permute.xlu0 %279
  %283 = vset.pattern.permute.xlu0 3
  %284 = vperm.xlu0 %283, %v264
  %v285 = vpop.permute.xlu0 %284
  %v287 = vadd.f32 %v275, %v280
  %v288 = vadd.f32 %v276, %v285
  %v289 = vmax.f32 %v287, 0.0
  %v290 = vmax.f32 %v288, 0.0
  %v291 = vmin.f32 %v289, 6.0
  %v292 = vmin.f32 %v290, 6.0
  %v293 = vpack.c.bf16 %v292, %v291
  %vm294 = vcmask 130048
  %v296 = vsel %vm294, %v26, 0
  %298 = vmatpush.bf16.msra.mxu0 0
  %299 = vmatpush.bf16.msra.mxu0 0
  %300 = vmatpush.bf16.msra.mxu0 0
  %301 = vmatpush.bf16.msra.mxu0 0
  %302 = vmatpush.bf16.msra.mxu0 0
  %303 = vmatpush.bf16.msra.mxu0 0
  %304 = vmatpush.bf16.msra.mxu0 0
  %305 = vmatpush.bf16.msra.mxu0 %v293
  %306 = vmatmul.bf16.gmra.mxu0 %v296
  %v307 = vpop.f32.mrf.mxu0
  %v308 = vadd.f32 0.0, %v307
  %v309 = vpop.f32.mrf.mxu0
  %310 = vdwg.mxu0
  %vm311 = vcmask 1043456
  %v312 = vsel %vm311, %v308, 0.0
  %313 = vadd.xlane.f32.xlu0 %v312
  %v314 = vpop.xlane.xlu0 %313
  %v315 = vmul.f32 %v308, %v308
  %v316 = vsel %vm311, %v315, 0.0
  %317 = vadd.xlane.f32.xlu0 %v316
  %v318 = vpop.xlane.xlu0 %317
  %v319 = vmul.f32 %v314, 0.0078125
  %v320 = vmul.f32 %v318, 0.0078125
  %v321 = vmul.f32 %v319, %v319
  %v322 = vsub.f32 %v320, %v321
  %v323 = vmax.f32 %v322, 0.0
  %v324 = vadd.f32 %v323, 1e-05
  %v325 = vrsqrt.pop %v324
  %v326 = vmul.f32 %v325, %v324
  %v327 = vmul.f32 %v326, %v325
  %v328 = vmul.f32 0.5, %v327
  %v329 = vsub.f32 1.5, %v328
  %v330 = vmul.f32 %v325, %v329
  %vm331 = vweird.f32 %v324
  %vm332 = vweird.f32 %v325
  %vm333 = vmor %vm331, %vm332
  %v334 = vsel %vm333, %v325, %v330
  %v335 = vmul.f32 %v334, %v27
  %v336 = vmul.f32 %v319, %v335
  %338 = vrot.lane.b32.xlu0 %v336, 1
  %v339 = vpop.permute.xlu0 %338
  %v341 = vsub.f32 %v27, %v339
  %343 = vset.pattern.permute.xlu0 4
  %344 = vperm.xlu0 %343, %v335
  %v345 = vpop.permute.xlu0 %344
  %v347 = vmul.f32 %v308, %v345
  %349 = vset.pattern.permute.xlu0 5
  %350 = vperm.xlu0 %349, %v341
  %v351 = vpop.permute.xlu0 %350
  %v353 = vadd.f32 %v347, %v351
  %v354 = vadd.f32 %v353, %v21
  %355 = vst [vmem:[%s5] sm:$0xf] %v354
  // Predicated region
  $region22: #{inverted_residual.1} parent=0 // pred_check
    _
  $region23: #{inverted_residual.1} parent=0 // pred_check_branch
    %357 = sbr.rel (0) target = $region25
  $region24: #{inverted_residual.1} parent=0 // pred_region
    _
  $region25: #{inverted_residual.1} parent=0 // pred_fallthru
    _
  // Predicated region
  $region26: #{inverted_residual.1} parent=0 // pred_check
    _
  $region27: #{inverted_residual.1} parent=0 // pred_check_branch
    %359 = sbr.rel (0) target = $region29
  $region28: #{inverted_residual.1} parent=0 // pred_region
    _
  $region29: #{inverted_residual.1} parent=0 // pred_fallthru
    _

</llo_original>
